<compile_context>
chip_gen: v7x
topology: tpu7x:2x2x1
jax: 0.10.0
libtpu: 0.0.40
codegen_flags: <defaults>
</compile_context>

<pallas_src>
import math

import jax
import jax.numpy as jnp
from jax.experimental import pallas as pl
from jax.experimental.pallas import tpu as pltpu

_LANES = 128
_TARGET_BLOCK_BYTES = 4 << 20   # per array per grid step
_VMEM_LIMIT_BYTES = 48 << 20    # 4 arrays x 2 buffers x 4 MiB = 32 MiB + headroom


def _sub_chain_kernel(a_ref, b_ref, c_ref, w_ref):
    # Literal 4-subtraction chain. Do NOT reassociate x - (x - c) into c:
    # the result is the f32 rounding residue and must match PyTorch exactly.
    c = c_ref[...]
    x = a_ref[...] - b_ref[...]
    y = x - c
    z = x - y
    w_ref[...] = z - c


def _ceil_to(value: int, multiple: int) -> int:
    return -(-value // multiple) * multiple


def module_sub_large(a: jax.Array, b: jax.Array, c: jax.Array) -> jax.Array:
    assert a.shape == b.shape == c.shape
    assert a.dtype == b.dtype == c.dtype

    orig_shape = a.shape
    dtype = a.dtype
    itemsize = jnp.dtype(dtype).itemsize
    sublanes = max(8, 32 // itemsize)   # 8 for f32, 16 for bf16, 32 for int8/fp8
    n_elems = math.prod(orig_shape)

    # Lane-dense (rows, 128) view.  Fast path: free contiguous reshape when
    # n_elems divides 128; otherwise pad the flat array only to the next lane
    # boundary (zeros: 0-0-0-0 = 0, sliced off afterwards).
    needs_pad = (n_elems % _LANES) != 0
    rows = pl.cdiv(n_elems, _LANES)

    def to_lane_dense(x):
        flat = x.reshape(-1)
        if needs_pad:
            flat = jnp.pad(flat, (0, rows * _LANES - n_elems))
        return flat.reshape(rows, _LANES)

    a2, b2, c2 = to_lane_dense(a), to_lane_dense(b), to_lane_dense(c)

    # Block sizing: up to ~_TARGET_BLOCK_BYTES per array per step, rows a
    # multiple of the dtype's sublane count (full-width unmasked vld/vst).
    # If everything fits one block but there is enough work, split into >= 2
    # steps so v7x's two TensorCores both get a share of the grid.
    max_block_rows = max(
        sublanes,
        (_TARGET_BLOCK_BYTES // (_LANES * itemsize)) // sublanes * sublanes,
    )
    if rows > max_block_rows:
        block_rows = max_block_rows
    elif rows >= 2 * sublanes:
        block_rows = _ceil_to(pl.cdiv(rows, 2), sublanes)
    else:
        block_rows = rows   # block equals full array dim (always legal)

    grid = (pl.cdiv(rows, block_rows),)
    spec = pl.BlockSpec((block_rows, _LANES), lambda i: (i, 0))

    out2 = pl.pallas_call(
        _sub_chain_kernel,
        out_shape=jax.ShapeDtypeStruct((rows, _LANES), dtype),
        grid=grid,
        in_specs=[spec, spec, spec],
        out_specs=spec,
        compiler_params=pltpu.CompilerParams(
            dimension_semantics=("parallel",),   # v7x: shard steps over 2 TCs
            vmem_limit_bytes=_VMEM_LIMIT_BYTES,
        ),
    )(a2, b2, c2)

    if needs_pad:
        return out2.reshape(-1)[:n_elems].reshape(orig_shape)
    return out2.reshape(orig_shape)


def _reference(a, b, c):
    x = a - b
    y = x - c
    z = x - y
    return z - c


if __name__ == "__main__":
    run = jax.jit(module_sub_large)

    # Case 1: matches ModuleSubLarge.get_random_inputs (n=10, needs lane pad).
    n = 10
    ka, kb, kc = jax.random.split(jax.random.PRNGKey(0), 3)
    a = jax.random.normal(ka, (n, n, n), dtype=jnp.float32)
    b = jax.random.normal(kb, (n, n, n), dtype=jnp.float32)
    c = jax.random.normal(kc, (n, n, n), dtype=jnp.float32)
    w = jax.block_until_ready(run(a, b, c))
    assert w.shape == (n, n, n)
    assert jnp.allclose(w, _reference(a, b, c), atol=1e-6), "mismatch (small case)"

    # Case 2: fast path (no padding), 2304 rows split over 2 parallel steps.
    k2a, k2b, k2c = jax.random.split(jax.random.PRNGKey(1), 3)
    shape2 = (48, 64, 96)
    a2 = jax.random.normal(k2a, shape2, dtype=jnp.float32)
    b2 = jax.random.normal(k2b, shape2, dtype=jnp.float32)
    c2 = jax.random.normal(k2c, shape2, dtype=jnp.float32)
    w2 = jax.block_until_ready(run(a2, b2, c2))
    assert w2.shape == shape2
    assert jnp.allclose(w2, _reference(a2, b2, c2), atol=1e-6), "mismatch (fast path)"

    # Case 3: ragged last block (rows not divisible by block_rows, masked writes).
    k3a, k3b, k3c = jax.random.split(jax.random.PRNGKey(2), 3)
    shape3 = (20, 128, 13)   # 260 rows -> block_rows=136, grid=2, last block ragged
    a3 = jax.random.normal(k3a, shape3, dtype=jnp.float32)
    b3 = jax.random.normal(k3b, shape3, dtype=jnp.float32)
    c3 = jax.random.normal(k3c, shape3, dtype=jnp.float32)
    w3 = jax.block_until_ready(run(a3, b3, c3))
    assert w3.shape == shape3
    assert jnp.allclose(w3, _reference(a3, b3, c3), atol=1e-6), "mismatch (ragged case)"

    print("KERNEL_OK")
</pallas_src>

<mosaic_0001>
module attributes {stable_mosaic.version = 11 : i64} {
  func.func @_sub_chain_kernel(%arg0: i32, %arg1: memref<8x128xf32, #tpu.memory_space<vmem>>, %arg2: memref<8x128xf32, #tpu.memory_space<vmem>>, %arg3: memref<8x128xf32, #tpu.memory_space<vmem>>, %arg4: memref<8x128xf32, #tpu.memory_space<vmem>>) attributes {dimension_semantics = [#tpu.dimension_semantics<parallel>], iteration_bounds = array<i64: 1>, scalar_prefetch = 0 : i64, scratch_operands = 0 : i64, tpu.core_type = #tpu.core_type<tc>, window_params = [{transform_indices = @transform_0, window_bounds = array<i64: 8, 128>}, {transform_indices = @transform_1, window_bounds = array<i64: 8, 128>}, {transform_indices = @transform_2, window_bounds = array<i64: 8, 128>}, {transform_indices = @transform_3, window_bounds = array<i64: 8, 128>}]} {
    %c0 = arith.constant 0 : index
    %c0_0 = arith.constant 0 : index
    %0 = vector.load %arg3[%c0, %c0_0] : memref<8x128xf32, #tpu.memory_space<vmem>>, vector<8x128xf32>
    %c0_1 = arith.constant 0 : index
    %c0_2 = arith.constant 0 : index
    %1 = vector.load %arg1[%c0_1, %c0_2] : memref<8x128xf32, #tpu.memory_space<vmem>>, vector<8x128xf32>
    %c0_3 = arith.constant 0 : index
    %c0_4 = arith.constant 0 : index
    %2 = vector.load %arg2[%c0_3, %c0_4] : memref<8x128xf32, #tpu.memory_space<vmem>>, vector<8x128xf32>
    %3 = arith.subf %1, %2 : vector<8x128xf32>
    %4 = arith.subf %3, %0 : vector<8x128xf32>
    %5 = arith.subf %3, %4 : vector<8x128xf32>
    %6 = arith.subf %5, %0 : vector<8x128xf32>
    %c0_5 = arith.constant 0 : index
    %c0_6 = arith.constant 0 : index
    %7 = vector.load %arg4[%c0_5, %c0_6] : memref<8x128xf32, #tpu.memory_space<vmem>>, vector<8x128xf32>
    tpu.vector_store %arg4[%c0_5, %c0_6], %6 {strides = array<i32>} : memref<8x128xf32, #tpu.memory_space<vmem>>, vector<8x128xf32>,
    return
  }
  func.func @transform_0(%arg0: i32) -> (i32, i32) {
    %c0_i32 = arith.constant 0 : i32
    %c0_i32_0 = arith.constant 0 : i32
    return %arg0, %c0_i32 : i32, i32
  }
  func.func @transform_1(%arg0: i32) -> (i32, i32) {
    %c0_i32 = arith.constant 0 : i32
    %c0_i32_0 = arith.constant 0 : i32
    return %arg0, %c0_i32 : i32, i32
  }
  func.func @transform_2(%arg0: i32) -> (i32, i32) {
    %c0_i32 = arith.constant 0 : i32
    %c0_i32_0 = arith.constant 0 : i32
    return %arg0, %c0_i32 : i32, i32
  }
  func.func @transform_3(%arg0: i32) -> (i32, i32) {
    %c0_i32 = arith.constant 0 : i32
    %c0_i32_0 = arith.constant 0 : i32
    return %arg0, %c0_i32 : i32, i32
  }
}

</mosaic_0001>

<llo_original>
// kernel: module_sub_large.1
$region0: #{module_sub_large.1}
  #allocation0 [shape = 'u32[]', space=smem, size = 0x4, offset = 0x4, fixed_abs, tag = 'smem constant byte address 0x4 - core index']
  #allocation1 [shape = 'u32[144,128]{1,0:T(1,128)}', space=vmem, size = 0x12000, scoped, tag = 'internal scratch']
  %s0 = inlined_call_operand.vmem [shape: f32[8,128], index: 0, kind: input, shape index: {}]
  %s1 = inlined_call_operand.vmem [shape: f32[8,128], index: 1, kind: input, shape index: {}]
  %s2 = inlined_call_operand.vmem [shape: f32[8,128], index: 2, kind: input, shape index: {}]
  %s3 = inlined_call_operand.vmem [shape: f32[8,128], index: 3, kind: output, shape index: {}]
  %s4 = sld [smem:[#allocation0]]
  $region22: #{module_sub_large.1} parent=0
    _
  %s6 = ssub.s32 1, %s4
  %s7 = scalar_select 0, %s6, %s4
  // Predicated region
  $region2: #{module_sub_large.1} parent=0 // pred_check
    _
  $region3: #{module_sub_large.1} parent=0 // pred_check_branch
    %9 = sbr.rel (0) target = $region5
  $region4: #{module_sub_large.1} parent=0 // pred_region
    _
  $region5: #{module_sub_large.1} parent=0 // pred_fallthru
    _
  // Predicated region
  $region6: #{module_sub_large.1} parent=0 // pred_check
    _
  $region7: #{module_sub_large.1} parent=0 // pred_check_branch
    %11 = sbr.rel (0) target = $region9
  $region8: #{module_sub_large.1} parent=0 // pred_region
    _
  $region9: #{module_sub_large.1} parent=0 // pred_fallthru
    _
  // Predicated region
  $region10: #{module_sub_large.1} parent=0 // pred_check
    _
  $region11: #{module_sub_large.1} parent=0 // pred_check_branch
    %13 = sbr.rel (0) target = $region13
  $region12: #{module_sub_large.1} parent=0 // pred_region
    _
  $region13: #{module_sub_large.1} parent=0 // pred_fallthru
    _
  %v14 = vld [vmem:[%s2] sm:$0xff]
  %v15 = vld [vmem:[%s0] sm:$0xff]
  %v16 = vld [vmem:[%s1] sm:$0xff]
  %v17 = vsub.f32 %v15, %v16
  %v18 = vsub.f32 %v17, %v14
  %v19 = vsub.f32 %v17, %v18
  %v20 = vsub.f32 %v19, %v14
  %21 = vst [vmem:[%s3] sm:$0xff] %v20
  // Predicated region
  $region14: #{module_sub_large.1} parent=0 // pred_check
    _
  $region15: #{module_sub_large.1} parent=0 // pred_check_branch
    %23 = sbr.rel (0) target = $region17
  $region16: #{module_sub_large.1} parent=0 // pred_region
    _
  $region17: #{module_sub_large.1} parent=0 // pred_fallthru
    _
  // Predicated region
  $region18: #{module_sub_large.1} parent=0 // pred_check
    _
  $region19: #{module_sub_large.1} parent=0 // pred_check_branch
    %25 = sbr.rel (0) target = $region21
  $region20: #{module_sub_large.1} parent=0 // pred_region
    _
  $region21: #{module_sub_large.1} parent=0 // pred_fallthru
    _

</llo_original>
